<compile_context>
chip_gen: v5e
topology: v5e:2x2
jax: 0.10.0
libtpu: 0.0.40
codegen_flags: <defaults>
</compile_context>

<pallas_src>
import math

import jax
import jax.numpy as jnp
from jax.experimental import pallas as pl
from jax.experimental.pallas import tpu as pltpu

BN_EPS = 1e-5  # nn.BatchNorm1d default


def _trans_pos_kernel(x_ref, pos_ref, bn_ref, wqkv_ref, wh_ref, bh_ref, out_ref):
    Bblk, T, F = x_ref.shape
    Cpad = bh_ref.shape[1]

    # ---- frozen BatchNorm1d (eval mode), folded host-side to one FMA ----
    scale = bn_ref[0:1, :]                                   # (1, F)
    shift = bn_ref[1:2, :]                                   # (1, F)
    xb = x_ref[...].reshape(Bblk * T, F) * scale + shift     # (Bblk*T, F) f32
    xb3 = xb.reshape(Bblk, T, F)

    # ---- additive positional encoding, broadcast over the batch block ----
    xp = xb3 + pos_ref[...][None, :, :]                      # (Bblk, T, F) f32

    # ---- fused QKV projection: one bf16 MXU matmul, f32 accumulation.
    #      1/sqrt(F) attention scale is pre-folded into the Wq slice. ----
    qkv = jnp.dot(xp.reshape(Bblk * T, F).astype(jnp.bfloat16), wqkv_ref[...],
                  preferred_element_type=jnp.float32)        # (Bblk*T, 3F) f32
    q = qkv[:, :F].reshape(Bblk, T, F)
    k = qkv[:, F:2 * F].reshape(Bblk, T, F)
    v = qkv[:, 2 * F:].reshape(Bblk, T, F)

    # ---- single-head scaled-dot-product self attention (batched) ----
    s = jnp.einsum("bqf,bkf->bqk",
                   q.astype(jnp.bfloat16), k.astype(jnp.bfloat16),
                   preferred_element_type=jnp.float32)       # (Bblk, T, T)
    s = s - jnp.max(s, axis=-1, keepdims=True)
    p = jnp.exp(s)
    attn = p * pl.reciprocal(jnp.sum(p, axis=-1, keepdims=True), approx=True)
    h = jnp.einsum("bqk,bkf->bqf",
                   attn.astype(jnp.bfloat16), v.astype(jnp.bfloat16),
                   preferred_element_type=jnp.float32) + xb3  # residual

    # ---- temporal mean pools ----
    z = jnp.mean(h, axis=1)                                   # (Bblk, F) attended
    zd = jnp.mean(xb3, axis=1)                                # (Bblk, F) branch input

    # ---- classification heads (lane-packed [Wc | Wc1]; 128-aligned slices) ----
    wh = wh_ref[...]
    logits = jnp.dot(z.astype(jnp.bfloat16), wh[:, :Cpad],
                     preferred_element_type=jnp.float32) + bh_ref[0:1, :]
    logits1 = jnp.dot(zd.astype(jnp.bfloat16), wh[:, Cpad:],
                      preferred_element_type=jnp.float32) + bh_ref[1:2, :]

    # ---- direct lane-dense stores at static 128-aligned offsets ----
    out_ref[:, :, 0:Cpad] = logits[None, :, :]
    out_ref[:, :, Cpad:Cpad + F] = z[None, :, :]
    out_ref[:, :, Cpad + F:2 * Cpad + F] = logits1[None, :, :]
    out_ref[:, :, 2 * Cpad + F:3 * Cpad + F] = jax.nn.sigmoid(logits)[None, :, :]
    out_ref[:, :, 3 * Cpad + F:4 * Cpad + F] = jax.nn.sigmoid(logits1)[None, :, :]


def _pick_block_b(B, T, F, budget_bytes=8 << 20):
    """Batch block size: keeps per-step f32 activation footprint under budget
    (sized for the v7x 64 MiB VMEM / 32 MiB scoped default, with double-buffer
    headroom), while dividing B so the grid is exact."""
    per_b = 4 * T * (10 * F + 3 * T)          # rough f32 bytes / batch element
    bb = max(1, min(B, budget_bytes // max(per_b, 1)))
    while B % bb:
        bb -= 1
    return bb


@jax.jit
def trans_pos_101_forward(x, params):
    """Returns (prediction, logits, z, prediction1, logits1), matching the module."""
    B, T, F = x.shape
    C = params["wc"].shape[1]
    assert T % 8 == 0, "max_frames must be a multiple of 8 (f32 sublane tile)"
    assert F % 128 == 0, "feature_dim must be a multiple of 128 (lane tile)"
    Cpad = ((C + 127) // 128) * 128

    # --- host-side folding / fusion (layout plumbing, not compute hoisting) ---
    gamma = params["gamma"].reshape(1, F)
    beta = params["beta"].reshape(1, F)
    mean = params["mean"].reshape(1, F)
    var = params["var"].reshape(1, F)
    bn_scale = gamma * jax.lax.rsqrt(var + BN_EPS)
    bn_shift = beta - mean * bn_scale
    bn = jnp.concatenate([bn_scale, bn_shift], axis=0)                 # (2, F)

    inv_sqrt_f = 1.0 / math.sqrt(F)
    wqkv = jnp.concatenate(
        [params["wq"] * inv_sqrt_f, params["wk"], params["wv"]], axis=1
    ).astype(jnp.bfloat16)                                             # (F, 3F) bf16

    def pad_w(w):
        return jnp.zeros((F, Cpad), jnp.float32).at[:, :C].set(w)

    def pad_b(b):
        return jnp.zeros((1, Cpad), jnp.float32).at[:, :C].set(b.reshape(1, C))

    wheads = jnp.concatenate([pad_w(params["wc"]), pad_w(params["wc1"])],
                             axis=1).astype(jnp.bfloat16)              # (F, 2Cpad)
    bheads = jnp.concatenate([pad_b(params["bc"]), pad_b(params["bc1"])],
                             axis=0)                                   # (2, Cpad)

    Bblk = _pick_block_b(B, T, F)
    nb = B // Bblk
    W = 4 * Cpad + F   # [logits | z | logits1 | pred | pred1]

    slab = pl.pallas_call(
        _trans_pos_kernel,
        out_shape=jax.ShapeDtypeStruct((nb, Bblk, W), jnp.float32),
        grid_spec=pltpu.PrefetchScalarGridSpec(
            num_scalar_prefetch=0,
            grid=(nb,),
            in_specs=[
                pl.BlockSpec((Bblk, T, F), lambda b: (b, 0, 0)),     # x block
                pl.BlockSpec((T, F), lambda b: (0, 0)),              # pos (resident)
                pl.BlockSpec((2, F), lambda b: (0, 0)),              # bn scale/shift
                pl.BlockSpec((F, 3 * F), lambda b: (0, 0)),          # fused Wqkv
                pl.BlockSpec((F, 2 * Cpad), lambda b: (0, 0)),       # [Wc | Wc1]
                pl.BlockSpec((2, Cpad), lambda b: (0, 0)),           # [bc ; bc1]
            ],
            out_specs=pl.BlockSpec((1, Bblk, W), lambda b: (b, 0, 0)),
        ),
        compiler_params=pltpu.CompilerParams(
            dimension_semantics=("parallel",),
            vmem_limit_bytes=32 * 1024 * 1024,
        ),
    )(x, params["pos"], bn, wqkv, wheads, bheads)

    slab = slab.reshape(B, W)
    logits = slab[:, :C]
    z = slab[:, Cpad:Cpad + F]
    logits1 = slab[:, Cpad + F:Cpad + F + C]
    prediction = slab[:, 2 * Cpad + F:2 * Cpad + F + C]
    prediction1 = slab[:, 3 * Cpad + F:3 * Cpad + F + C]
    return prediction, logits, z, prediction1, logits1


def _reference_forward(x, params):
    """Pure-JAX f32 reference (same surrogate attention semantics)."""
    B, T, F = x.shape
    xb = ((x.reshape(B * T, F) - params["mean"]) *
          jax.lax.rsqrt(params["var"] + BN_EPS) * params["gamma"] + params["beta"])
    xb = xb.reshape(B, T, F)
    xp = xb + params["pos"][None]
    q = xp @ params["wq"]
    k = xp @ params["wk"]
    v = xp @ params["wv"]
    s = jnp.einsum("bqf,bkf->bqk", q, k) / math.sqrt(F)
    attn = jax.nn.softmax(s, axis=-1)
    h = jnp.einsum("bqk,bkf->bqf", attn, v) + xb
    z = jnp.mean(h, axis=1)
    zd = jnp.mean(xb, axis=1)
    logits = z @ params["wc"] + params["bc"]
    logits1 = zd @ params["wc1"] + params["bc1"]
    return jax.nn.sigmoid(logits), logits, z, jax.nn.sigmoid(logits1), logits1


def make_params(key, T, F, C):
    ks = jax.random.split(key, 10)
    s = 0.05
    return {
        # BatchNorm1d(feature_size) — frozen, eval-mode running stats
        "gamma": 1.0 + s * jax.random.normal(ks[0], (F,), jnp.float32),
        "beta":  s * jax.random.normal(ks[1], (F,), jnp.float32),
        "mean":  s * jax.random.normal(ks[2], (F,), jnp.float32),
        "var":   1.0 + 0.1 * jax.random.uniform(ks[3], (F,), jnp.float32),
        # positional encoding + attention projections (trans_zijida_pos_101 surrogate)
        "pos": s * jax.random.normal(ks[4], (T, F), jnp.float32),
        "wq":  s * jax.random.normal(ks[5], (F, F), jnp.float32),
        "wk":  s * jax.random.normal(ks[6], (F, F), jnp.float32),
        "wv":  s * jax.random.normal(ks[7], (F, F), jnp.float32),
        # main classification head and branch head
        "wc":  s * jax.random.normal(ks[8], (F, C), jnp.float32),
        "bc":  jnp.zeros((C,), jnp.float32),
        "wc1": s * jax.random.normal(ks[9], (F, C), jnp.float32),
        "bc1": jnp.zeros((C,), jnp.float32),
    }


if __name__ == "__main__":
    # small shapes: (batch, max_frames, feature_dim, num_class)
    B, T, F, C = 2, 8, 128, 16
    key = jax.random.PRNGKey(0)
    kx, kp = jax.random.split(key)

    x = jax.random.normal(kx, (B, T, F), jnp.float32)
    params = make_params(kp, T, F, C)

    outs = jax.block_until_ready(trans_pos_101_forward(x, params))
    prediction, logits, z, prediction1, logits1 = outs

    assert prediction.shape == (B, C) and logits.shape == (B, C)
    assert z.shape == (B, F)
    assert prediction1.shape == (B, C) and logits1.shape == (B, C)
    for o in outs:
        assert bool(jnp.all(jnp.isfinite(o)))

    # correctness vs pure-JAX f32 reference (tolerance covers bf16 matmul
    # operands + approx softmax reciprocal)
    refs = _reference_forward(x, params)
    for got, want in zip(outs, refs):
        assert float(jnp.max(jnp.abs(got - want))) < 1e-1

    print("KERNEL_OK")
</pallas_src>

<mosaic_0001>
module attributes {stable_mosaic.version = 11 : i64} {
  func.func @_trans_pos_kernel(%arg0: i32, %arg1: memref<2x8x128xf32, #tpu.memory_space<vmem>>, %arg2: memref<8x128xf32, #tpu.memory_space<vmem>>, %arg3: memref<2x128xf32, #tpu.memory_space<vmem>>, %arg4: memref<128x384xbf16, #tpu.memory_space<vmem>>, %arg5: memref<128x256xbf16, #tpu.memory_space<vmem>>, %arg6: memref<2x128xf32, #tpu.memory_space<vmem>>, %arg7: memref<1x2x640xf32, #tpu.memory_space<vmem>>) attributes {dimension_semantics = [#tpu.dimension_semantics<parallel>], iteration_bounds = array<i64: 1>, scalar_prefetch = 0 : i64, scratch_operands = 0 : i64, tpu.core_type = #tpu.core_type<tc>, window_params = [{transform_indices = @transform_0, window_bounds = array<i64: 2, 8, 128>}, {pipeline_mode = #tpu.pipeline_mode<synchronous>, transform_indices = @transform_1, window_bounds = array<i64: 8, 128>}, {pipeline_mode = #tpu.pipeline_mode<synchronous>, transform_indices = @transform_2, window_bounds = array<i64: 2, 128>}, {pipeline_mode = #tpu.pipeline_mode<synchronous>, transform_indices = @transform_3, window_bounds = array<i64: 128, 384>}, {pipeline_mode = #tpu.pipeline_mode<synchronous>, transform_indices = @transform_4, window_bounds = array<i64: 128, 256>}, {pipeline_mode = #tpu.pipeline_mode<synchronous>, transform_indices = @transform_5, window_bounds = array<i64: 2, 128>}, {transform_indices = @transform_6, window_bounds = array<i64: 1, 2, 640>}]} {
    %c0 = arith.constant 0 : index
    %c0_0 = arith.constant 0 : index
    %0 = vector.load %arg3[%c0, %c0_0] : memref<2x128xf32, #tpu.memory_space<vmem>>, vector<1x128xf32>
    %c1 = arith.constant 1 : index
    %c0_1 = arith.constant 0 : index
    %1 = vector.load %arg3[%c1, %c0_1] : memref<2x128xf32, #tpu.memory_space<vmem>>, vector<1x128xf32>
    %c0_2 = arith.constant 0 : index
    %c0_3 = arith.constant 0 : index
    %c0_4 = arith.constant 0 : index
    %2 = vector.load %arg1[%c0_2, %c0_3, %c0_4] : memref<2x8x128xf32, #tpu.memory_space<vmem>>, vector<2x8x128xf32>
    %3 = vector.shape_cast %2 : vector<2x8x128xf32> to vector<16x128xf32>
    %4 = vector.broadcast %0 : vector<1x128xf32> to vector<16x128xf32>
    %5 = arith.mulf %3, %4 : vector<16x128xf32>
    %6 = vector.broadcast %1 : vector<1x128xf32> to vector<16x128xf32>
    %7 = arith.addf %5, %6 : vector<16x128xf32>
    %8 = vector.shape_cast %7 : vector<16x128xf32> to vector<2x8x128xf32>
    %c0_5 = arith.constant 0 : index
    %c0_6 = arith.constant 0 : index
    %9 = vector.load %arg2[%c0_5, %c0_6] : memref<8x128xf32, #tpu.memory_space<vmem>>, vector<8x128xf32>
    %10 = vector.shape_cast %9 : vector<8x128xf32> to vector<1x8x128xf32>
    %11 = vector.broadcast %10 : vector<1x8x128xf32> to vector<2x8x128xf32>
    %12 = arith.addf %8, %11 : vector<2x8x128xf32>
    %13 = vector.shape_cast %12 : vector<2x8x128xf32> to vector<16x128xf32>
    %14 = arith.truncf %13 : vector<16x128xf32> to vector<16x128xbf16>
    %c0_7 = arith.constant 0 : index
    %c0_8 = arith.constant 0 : index
    %15 = vector.load %arg4[%c0_7, %c0_8] : memref<128x384xbf16, #tpu.memory_space<vmem>>, vector<128x384xbf16>
    %cst = arith.constant dense<0.000000e+00> : vector<16x384xf32>
    %16 = tpu.matmul %14, %15, %cst {dimension_numbers = #tpu.dot_dimension_numbers<[1], [0], [0], [1], [0, 0, 1, 1], [], []>} : vector<16x128xbf16>, vector<128x384xbf16>, vector<16x384xf32> -> vector<16x384xf32>
    %17 = vector.extract_strided_slice %16 {offsets = [0, 0], sizes = [16, 128], strides = [1, 1]} : vector<16x384xf32> to vector<16x128xf32>
    %18 = vector.shape_cast %17 : vector<16x128xf32> to vector<2x8x128xf32>
    %19 = vector.extract_strided_slice %16 {offsets = [0, 128], sizes = [16, 128], strides = [1, 1]} : vector<16x384xf32> to vector<16x128xf32>
    %20 = vector.shape_cast %19 : vector<16x128xf32> to vector<2x8x128xf32>
    %21 = vector.extract_strided_slice %16 {offsets = [0, 256], sizes = [16, 128], strides = [1, 1]} : vector<16x384xf32> to vector<16x128xf32>
    %22 = vector.shape_cast %21 : vector<16x128xf32> to vector<2x8x128xf32>
    %23 = arith.truncf %18 : vector<2x8x128xf32> to vector<2x8x128xbf16>
    %24 = arith.truncf %20 : vector<2x8x128xf32> to vector<2x8x128xbf16>
    "tpu.trace_start"() <{level = 10 : i32, message = "bqf,bkf->bqk"}> : () -> ()
    %cst_9 = arith.constant dense<0.000000e+00> : vector<2x8x8xf32>
    %25 = tpu.matmul %23, %24, %cst_9 {dimension_numbers = #tpu.dot_dimension_numbers<[2], [2], [1], [1], [0, 0, 0, 1, 1, 1], [0], [0]>} : vector<2x8x128xbf16>, vector<2x8x128xbf16>, vector<2x8x8xf32> -> vector<2x8x8xf32>
    "tpu.trace_stop"() : () -> ()
    %cst_10 = arith.constant dense<0xFF800000> : vector<2x8xf32>
    %26 = vector.multi_reduction <maximumf>, %25, %cst_10 [2] : vector<2x8x8xf32> to vector<2x8xf32>
    %27 = vector.shape_cast %26 : vector<2x8xf32> to vector<2x8x1xf32>
    %28 = vector.broadcast %27 : vector<2x8x1xf32> to vector<2x8x8xf32>
    %29 = arith.subf %25, %28 : vector<2x8x8xf32>
    %30 = math.exp %29 : vector<2x8x8xf32>
    %cst_11 = arith.constant dense<0.000000e+00> : vector<2x8xf32>
    %31 = vector.multi_reduction <add>, %30, %cst_11 [2] : vector<2x8x8xf32> to vector<2x8xf32>
    %32 = vector.shape_cast %31 : vector<2x8xf32> to vector<2x8x1xf32>
    %33 = tpu.reciprocal %32 {approx = true} : vector<2x8x1xf32> -> vector<2x8x1xf32>
    %34 = vector.broadcast %33 : vector<2x8x1xf32> to vector<2x8x8xf32>
    %35 = arith.mulf %30, %34 : vector<2x8x8xf32>
    %36 = arith.truncf %35 : vector<2x8x8xf32> to vector<2x8x8xbf16>
    %37 = arith.truncf %22 : vector<2x8x128xf32> to vector<2x8x128xbf16>
    "tpu.trace_start"() <{level = 10 : i32, message = "bqk,bkf->bqf"}> : () -> ()
    %cst_12 = arith.constant dense<0.000000e+00> : vector<2x8x128xf32>
    %38 = tpu.matmul %36, %37, %cst_12 {dimension_numbers = #tpu.dot_dimension_numbers<[2], [1], [1], [2], [0, 0, 0, 1, 1, 2], [0], [0]>} : vector<2x8x8xbf16>, vector<2x8x128xbf16>, vector<2x8x128xf32> -> vector<2x8x128xf32>
    "tpu.trace_stop"() : () -> ()
    %39 = arith.addf %38, %8 : vector<2x8x128xf32>
    %cst_13 = arith.constant dense<0.000000e+00> : vector<2x128xf32>
    %40 = vector.multi_reduction <add>, %39, %cst_13 [1] : vector<2x8x128xf32> to vector<2x128xf32>
    %cst_14 = arith.constant 8.000000e+00 : f32
    %41 = vector.broadcast %cst_14 : f32 to vector<2x128xf32>
    %42 = arith.divf %40, %41 : vector<2x128xf32>
    %cst_15 = arith.constant dense<0.000000e+00> : vector<2x128xf32>
    %43 = vector.multi_reduction <add>, %8, %cst_15 [1] : vector<2x8x128xf32> to vector<2x128xf32>
    %cst_16 = arith.constant 8.000000e+00 : f32
    %44 = vector.broadcast %cst_16 : f32 to vector<2x128xf32>
    %45 = arith.divf %43, %44 : vector<2x128xf32>
    %c0_17 = arith.constant 0 : index
    %c0_18 = arith.constant 0 : index
    %46 = vector.load %arg5[%c0_17, %c0_18] : memref<128x256xbf16, #tpu.memory_space<vmem>>, vector<128x256xbf16>
    %47 = arith.truncf %42 : vector<2x128xf32> to vector<2x128xbf16>
    %48 = vector.extract_strided_slice %46 {offsets = [0, 0], sizes = [128, 128], strides = [1, 1]} : vector<128x256xbf16> to vector<128x128xbf16>
    %cst_19 = arith.constant dense<0.000000e+00> : vector<2x128xf32>
    %49 = tpu.matmul %47, %48, %cst_19 {dimension_numbers = #tpu.dot_dimension_numbers<[1], [0], [0], [1], [0, 0, 1, 1], [], []>} : vector<2x128xbf16>, vector<128x128xbf16>, vector<2x128xf32> -> vector<2x128xf32>
    %c0_20 = arith.constant 0 : index
    %c0_21 = arith.constant 0 : index
    %50 = vector.load %arg6[%c0_20, %c0_21] : memref<2x128xf32, #tpu.memory_space<vmem>>, vector<1x128xf32>
    %51 = vector.broadcast %50 : vector<1x128xf32> to vector<2x128xf32>
    %52 = arith.addf %49, %51 : vector<2x128xf32>
    %53 = arith.truncf %45 : vector<2x128xf32> to vector<2x128xbf16>
    %54 = vector.extract_strided_slice %46 {offsets = [0, 128], sizes = [128, 128], strides = [1, 1]} : vector<128x256xbf16> to vector<128x128xbf16>
    %cst_22 = arith.constant dense<0.000000e+00> : vector<2x128xf32>
    %55 = tpu.matmul %53, %54, %cst_22 {dimension_numbers = #tpu.dot_dimension_numbers<[1], [0], [0], [1], [0, 0, 1, 1], [], []>} : vector<2x128xbf16>, vector<128x128xbf16>, vector<2x128xf32> -> vector<2x128xf32>
    %c1_23 = arith.constant 1 : index
    %c0_24 = arith.constant 0 : index
    %56 = vector.load %arg6[%c1_23, %c0_24] : memref<2x128xf32, #tpu.memory_space<vmem>>, vector<1x128xf32>
    %57 = vector.broadcast %56 : vector<1x128xf32> to vector<2x128xf32>
    %58 = arith.addf %55, %57 : vector<2x128xf32>
    %59 = vector.shape_cast %52 : vector<2x128xf32> to vector<1x2x128xf32>
    %c0_25 = arith.constant 0 : index
    %c0_26 = arith.constant 0 : index
    %c0_27 = arith.constant 0 : index
    %60 = vector.load %arg7[%c0_25, %c0_26, %c0_27] : memref<1x2x640xf32, #tpu.memory_space<vmem>>, vector<1x2x128xf32>
    tpu.vector_store %arg7[%c0_25, %c0_26, %c0_27], %59 {strides = array<i32>} : memref<1x2x640xf32, #tpu.memory_space<vmem>>, vector<1x2x128xf32>,
    %61 = vector.shape_cast %42 : vector<2x128xf32> to vector<1x2x128xf32>
    %c0_28 = arith.constant 0 : index
    %c0_29 = arith.constant 0 : index
    %c128 = arith.constant 128 : index
    %62 = vector.load %arg7[%c0_28, %c0_29, %c128] : memref<1x2x640xf32, #tpu.memory_space<vmem>>, vector<1x2x128xf32>
    tpu.vector_store %arg7[%c0_28, %c0_29, %c128], %61 {strides = array<i32>} : memref<1x2x640xf32, #tpu.memory_space<vmem>>, vector<1x2x128xf32>,
    %63 = vector.shape_cast %58 : vector<2x128xf32> to vector<1x2x128xf32>
    %c0_30 = arith.constant 0 : index
    %c0_31 = arith.constant 0 : index
    %c256 = arith.constant 256 : index
    %64 = vector.load %arg7[%c0_30, %c0_31, %c256] : memref<1x2x640xf32, #tpu.memory_space<vmem>>, vector<1x2x128xf32>
    tpu.vector_store %arg7[%c0_30, %c0_31, %c256], %63 {strides = array<i32>} : memref<1x2x640xf32, #tpu.memory_space<vmem>>, vector<1x2x128xf32>,
    %65 = arith.negf %52 : vector<2x128xf32>
    %66 = math.exp %65 : vector<2x128xf32>
    %cst_32 = arith.constant 1.000000e+00 : f32
    %67 = vector.broadcast %cst_32 : f32 to vector<2x128xf32>
    %68 = arith.addf %67, %66 : vector<2x128xf32>
    %69 = arith.divf %67, %68 : vector<2x128xf32>
    %70 = vector.shape_cast %69 : vector<2x128xf32> to vector<1x2x128xf32>
    %c0_33 = arith.constant 0 : index
    %c0_34 = arith.constant 0 : index
    %c384 = arith.constant 384 : index
    %71 = vector.load %arg7[%c0_33, %c0_34, %c384] : memref<1x2x640xf32, #tpu.memory_space<vmem>>, vector<1x2x128xf32>
    tpu.vector_store %arg7[%c0_33, %c0_34, %c384], %70 {strides = array<i32>} : memref<1x2x640xf32, #tpu.memory_space<vmem>>, vector<1x2x128xf32>,
    %72 = arith.negf %58 : vector<2x128xf32>
    %73 = math.exp %72 : vector<2x128xf32>
    %cst_35 = arith.constant 1.000000e+00 : f32
    %74 = vector.broadcast %cst_35 : f32 to vector<2x128xf32>
    %75 = arith.addf %74, %73 : vector<2x128xf32>
    %76 = arith.divf %74, %75 : vector<2x128xf32>
    %77 = vector.shape_cast %76 : vector<2x128xf32> to vector<1x2x128xf32>
    %c0_36 = arith.constant 0 : index
    %c0_37 = arith.constant 0 : index
    %c512 = arith.constant 512 : index
    %78 = vector.load %arg7[%c0_36, %c0_37, %c512] : memref<1x2x640xf32, #tpu.memory_space<vmem>>, vector<1x2x128xf32>
    tpu.vector_store %arg7[%c0_36, %c0_37, %c512], %77 {strides = array<i32>} : memref<1x2x640xf32, #tpu.memory_space<vmem>>, vector<1x2x128xf32>,
    return
  }
  func.func @transform_0(%arg0: i32) -> (i32, i32, i32) {
    %c0_i32 = arith.constant 0 : i32
    %c0_i32_0 = arith.constant 0 : i32
    %c0_i32_1 = arith.constant 0 : i32
    return %arg0, %c0_i32, %c0_i32_0 : i32, i32, i32
  }
  func.func @transform_1(%arg0: i32) -> (i32, i32) {
    %c0_i32 = arith.constant 0 : i32
    %c0_i32_0 = arith.constant 0 : i32
    %c0_i32_1 = arith.constant 0 : i32
    return %c0_i32, %c0_i32_0 : i32, i32
  }
  func.func @transform_2(%arg0: i32) -> (i32, i32) {
    %c0_i32 = arith.constant 0 : i32
    %c0_i32_0 = arith.constant 0 : i32
    %c0_i32_1 = arith.constant 0 : i32
    return %c0_i32, %c0_i32_0 : i32, i32
  }
  func.func @transform_3(%arg0: i32) -> (i32, i32) {
    %c0_i32 = arith.constant 0 : i32
    %c0_i32_0 = arith.constant 0 : i32
    %c0_i32_1 = arith.constant 0 : i32
    return %c0_i32, %c0_i32_0 : i32, i32
  }
  func.func @transform_4(%arg0: i32) -> (i32, i32) {
    %c0_i32 = arith.constant 0 : i32
    %c0_i32_0 = arith.constant 0 : i32
    %c0_i32_1 = arith.constant 0 : i32
    return %c0_i32, %c0_i32_0 : i32, i32
  }
  func.func @transform_5(%arg0: i32) -> (i32, i32) {
    %c0_i32 = arith.constant 0 : i32
    %c0_i32_0 = arith.constant 0 : i32
    %c0_i32_1 = arith.constant 0 : i32
    return %c0_i32, %c0_i32_0 : i32, i32
  }
  func.func @transform_6(%arg0: i32) -> (i32, i32, i32) {
    %c0_i32 = arith.constant 0 : i32
    %c0_i32_0 = arith.constant 0 : i32
    %c0_i32_1 = arith.constant 0 : i32
    return %arg0, %c0_i32, %c0_i32_0 : i32, i32, i32
  }
}

</mosaic_0001>

<llo_original>
// kernel: trans_pos_101_forward.1
$region0: #{trans_pos_101_forward.1}
  #allocation0 [shape = 'u32[]', space=smem, size = 0x4, offset = 0x4, fixed_abs, tag = 'smem constant byte address 0x4 - core index']
  #allocation1 [shape = 'u32[72,128]{1,0:T(1,128)}', space=vmem, size = 0x9000, scoped, tag = 'internal scratch']
  %s0 = inlined_call_operand.vmem [shape: f32[2,8,128], index: 0, kind: input, shape index: {}]
  %s1 = inlined_call_operand.vmem [shape: f32[8,128], index: 1, kind: input, shape index: {}]
  %s2 = inlined_call_operand.vmem [shape: f32[2,128], index: 2, kind: input, shape index: {}]
  %s3 = inlined_call_operand.vmem [shape: bf16[128,384], index: 3, kind: input, shape index: {}]
  %s4 = inlined_call_operand.vmem [shape: bf16[128,256], index: 4, kind: input, shape index: {}]
  %s5 = inlined_call_operand.vmem [shape: f32[2,128], index: 5, kind: input, shape index: {}]
  %s6 = inlined_call_operand.vmem [shape: f32[1,2,640], index: 6, kind: output, shape index: {}]
  %s7 = sld [smem:[#allocation0]]
  $region34: #{trans_pos_101_forward.1} parent=0
    _
  %s9 = ssub.s32 1, %s7
  %s10 = scalar_select 0, %s9, %s7
  // Predicated region
  $region2: #{trans_pos_101_forward.1} parent=0 // pred_check
    _
  $region3: #{trans_pos_101_forward.1} parent=0 // pred_check_branch
    %12 = sbr.rel (0) target = $region5
  $region4: #{trans_pos_101_forward.1} parent=0 // pred_region
    _
  $region5: #{trans_pos_101_forward.1} parent=0 // pred_fallthru
    _
  // Predicated region
  $region6: #{trans_pos_101_forward.1} parent=0 // pred_check
    _
  $region7: #{trans_pos_101_forward.1} parent=0 // pred_check_branch
    %14 = sbr.rel (0) target = $region9
  $region8: #{trans_pos_101_forward.1} parent=0 // pred_region
    _
  $region9: #{trans_pos_101_forward.1} parent=0 // pred_fallthru
    _
  // Predicated region
  $region10: #{trans_pos_101_forward.1} parent=0 // pred_check
    _
  $region11: #{trans_pos_101_forward.1} parent=0 // pred_check_branch
    %16 = sbr.rel (0) target = $region13
  $region12: #{trans_pos_101_forward.1} parent=0 // pred_region
    _
  $region13: #{trans_pos_101_forward.1} parent=0 // pred_fallthru
    _
  // Predicated region
  $region14: #{trans_pos_101_forward.1} parent=0 // pred_check
    _
  $region15: #{trans_pos_101_forward.1} parent=0 // pred_check_branch
    %18 = sbr.rel (0) target = $region17
  $region16: #{trans_pos_101_forward.1} parent=0 // pred_region
    _
  $region17: #{trans_pos_101_forward.1} parent=0 // pred_fallthru
    _
  // Predicated region
  $region18: #{trans_pos_101_forward.1} parent=0 // pred_check
    _
  $region19: #{trans_pos_101_forward.1} parent=0 // pred_check_branch
    %20 = sbr.rel (0) target = $region21
  $region20: #{trans_pos_101_forward.1} parent=0 // pred_region
    _
  $region21: #{trans_pos_101_forward.1} parent=0 // pred_fallthru
    _
  // Predicated region
  $region22: #{trans_pos_101_forward.1} parent=0 // pred_check
    _
  $region23: #{trans_pos_101_forward.1} parent=0 // pred_check_branch
    %22 = sbr.rel (0) target = $region25
  $region24: #{trans_pos_101_forward.1} parent=0 // pred_region
    _
  $region25: #{trans_pos_101_forward.1} parent=0 // pred_fallthru
    _
  %v24 = vld [vmem:[%s2] sm:$0x1]
  %v25 = vld [vmem:[%s2 + $0x1] sm:$0x1]
  %v26 = vld [vmem:[%s0] sm:$0xff]
  %v27 = vld [vmem:[%s0 + $0x8] sm:$0xff]
  %v28 = vperm.slane %v24, 0
  %v29 = vmul.f32 %v26, %v28
  %v30 = vmul.f32 %v27, %v28
  %v31 = vperm.slane %v25, 0
  %v32 = vadd.f32 %v29, %v31
  %v33 = vadd.f32 %v30, %v31
  %v34 = vld [vmem:[%s1] sm:$0xff]
  %v35 = vadd.f32 %v32, %v34
  %v36 = vadd.f32 %v33, %v34
  %v37 = vpack.c.bf16 %v36, %v35
  %v38 = vld [vmem:[%s3] sm:$0xff]
  %v39 = vld [vmem:[%s3 + $0x8] sm:$0xf]
  %v40 = vld [vmem:[%s3 + $0xc] sm:$0xff]
  %v41 = vld [vmem:[%s3 + $0x14] sm:$0xf]
  %v42 = vld [vmem:[%s3 + $0x18] sm:$0xff]
  %v43 = vld [vmem:[%s3 + $0x20] sm:$0xf]
  %v44 = vld [vmem:[%s3 + $0x24] sm:$0xff]
  %v45 = vld [vmem:[%s3 + $0x2c] sm:$0xf]
  %v46 = vld [vmem:[%s3 + $0x30] sm:$0xff]
  %v47 = vld [vmem:[%s3 + $0x38] sm:$0xf]
  %v48 = vld [vmem:[%s3 + $0x3c] sm:$0xff]
  %v49 = vld [vmem:[%s3 + $0x44] sm:$0xf]
  %v50 = vld [vmem:[%s3 + $0x48] sm:$0xff]
  %v51 = vld [vmem:[%s3 + $0x50] sm:$0xf]
  %v52 = vld [vmem:[%s3 + $0x54] sm:$0xff]
  %v53 = vld [vmem:[%s3 + $0x5c] sm:$0xf]
  %v54 = vld [vmem:[%s3 + $0x60] sm:$0xff]
  %v55 = vld [vmem:[%s3 + $0x68] sm:$0xf]
  %v56 = vld [vmem:[%s3 + $0x6c] sm:$0xff]
  %v57 = vld [vmem:[%s3 + $0x74] sm:$0xf]
  %v58 = vld [vmem:[%s3 + $0x78] sm:$0xff]
  %v59 = vld [vmem:[%s3 + $0x80] sm:$0xf]
  %v60 = vld [vmem:[%s3 + $0x84] sm:$0xff]
  %v61 = vld [vmem:[%s3 + $0x8c] sm:$0xf]
  %v62 = vld [vmem:[%s3 + $0x90] sm:$0xff]
  %v63 = vld [vmem:[%s3 + $0x98] sm:$0xf]
  %v64 = vld [vmem:[%s3 + $0x9c] sm:$0xff]
  %v65 = vld [vmem:[%s3 + $0xa4] sm:$0xf]
  %v66 = vld [vmem:[%s3 + $0xa8] sm:$0xff]
  %v67 = vld [vmem:[%s3 + $0xb0] sm:$0xf]
  %v68 = vld [vmem:[%s3 + $0xb4] sm:$0xff]
  %v69 = vld [vmem:[%s3 + $0xbc] sm:$0xf]
  %v102 = vunpack.c.l.b16 %v38
  %v103 = vunpack.c.h.b16 %v38
  %v104 = vunpack.c.l.b16 %v39
  %v105 = vunpack.c.l.b16 %v40
  %v106 = vunpack.c.h.b16 %v40
  %v107 = vunpack.c.l.b16 %v41
  %v108 = vunpack.c.l.b16 %v42
  %v109 = vunpack.c.h.b16 %v42
  %v110 = vunpack.c.l.b16 %v43
  %v111 = vunpack.c.l.b16 %v44
  %v112 = vunpack.c.h.b16 %v44
  %v113 = vunpack.c.l.b16 %v45
  %v114 = vunpack.c.l.b16 %v46
  %v115 = vunpack.c.h.b16 %v46
  %v116 = vunpack.c.l.b16 %v47
  %v117 = vunpack.c.l.b16 %v48
  %v118 = vunpack.c.h.b16 %v48
  %v119 = vunpack.c.l.b16 %v49
  %v120 = vunpack.c.l.b16 %v50
  %v121 = vunpack.c.h.b16 %v50
  %v122 = vunpack.c.l.b16 %v51
  %v123 = vunpack.c.l.b16 %v52
  %v124 = vunpack.c.h.b16 %v52
  %v125 = vunpack.c.l.b16 %v53
  %v126 = vunpack.c.l.b16 %v54
  %v127 = vunpack.c.h.b16 %v54
  %v128 = vunpack.c.l.b16 %v55
  %v129 = vunpack.c.l.b16 %v56
  %v130 = vunpack.c.h.b16 %v56
  %v131 = vunpack.c.l.b16 %v57
  %v132 = vunpack.c.l.b16 %v58
  %v133 = vunpack.c.h.b16 %v58
  %v134 = vunpack.c.l.b16 %v59
  %v135 = vunpack.c.l.b16 %v60
  %v136 = vunpack.c.h.b16 %v60
  %v137 = vunpack.c.l.b16 %v61
  %v138 = vunpack.c.l.b16 %v62
  %v139 = vunpack.c.h.b16 %v62
  %v140 = vunpack.c.l.b16 %v63
  %v141 = vunpack.c.l.b16 %v64
  %v142 = vunpack.c.h.b16 %v64
  %v143 = vunpack.c.l.b16 %v65
  %v144 = vunpack.c.l.b16 %v66
  %v145 = vunpack.c.h.b16 %v66
  %v146 = vunpack.c.l.b16 %v67
  %v147 = vunpack.c.l.b16 %v68
  %v148 = vunpack.c.h.b16 %v68
  %v149 = vunpack.c.l.b16 %v69
  %v150 = vpack.c.b16 %v105, %v102
  %v151 = vpack.c.b16 %v106, %v103
  %v152 = vpack.c.b16 %v107, %v104
  %v153 = vpack.c.b16 %v111, %v108
  %v154 = vpack.c.b16 %v112, %v109
  %v155 = vpack.c.b16 %v113, %v110
  %v156 = vpack.c.b16 %v117, %v114
  %v157 = vpack.c.b16 %v118, %v115
  %v158 = vpack.c.b16 %v119, %v116
  %v159 = vpack.c.b16 %v123, %v120
  %v160 = vpack.c.b16 %v124, %v121
  %v161 = vpack.c.b16 %v125, %v122
  %v162 = vpack.c.b16 %v129, %v126
  %v163 = vpack.c.b16 %v130, %v127
  %v164 = vpack.c.b16 %v131, %v128
  %v165 = vpack.c.b16 %v135, %v132
  %v166 = vpack.c.b16 %v136, %v133
  %v167 = vpack.c.b16 %v137, %v134
  %v168 = vpack.c.b16 %v141, %v138
  %v169 = vpack.c.b16 %v142, %v139
  %v170 = vpack.c.b16 %v143, %v140
  %v171 = vpack.c.b16 %v147, %v144
  %v172 = vpack.c.b16 %v148, %v145
  %v173 = vpack.c.b16 %v149, %v146
  %198 = vmatpush.bf16.msra.mxu0 %v171
  %199 = vmatpush.bf16.msra.mxu0 %v168
  %200 = vmatpush.bf16.msra.mxu0 %v165
  %201 = vmatpush.bf16.msra.mxu0 %v162
  %202 = vmatpush.bf16.msra.mxu0 %v159
  %203 = vmatpush.bf16.msra.mxu0 %v156
  %204 = vmatpush.bf16.msra.mxu0 %v153
  %205 = vmatpush.bf16.msra.mxu0 %v150
  %206 = vmatmul.bf16.gmra.mxu0 %v37
  %v207 = vpop.f32.mrf.mxu0
  %v208 = vadd.f32 0.0, %v207
  %v209 = vpop.f32.mrf.mxu0
  %v210 = vadd.f32 0.0, %v209
  %211 = vdwg.mxu0
  %212 = vmatpush.bf16.msra.mxu0 %v172
  %213 = vmatpush.bf16.msra.mxu0 %v169
  %214 = vmatpush.bf16.msra.mxu0 %v166
  %215 = vmatpush.bf16.msra.mxu0 %v163
  %216 = vmatpush.bf16.msra.mxu0 %v160
  %217 = vmatpush.bf16.msra.mxu0 %v157
  %218 = vmatpush.bf16.msra.mxu0 %v154
  %219 = vmatpush.bf16.msra.mxu0 %v151
  %220 = vmatmul.bf16.gmra.mxu0 %v37
  %v221 = vpop.f32.mrf.mxu0
  %v222 = vadd.f32 0.0, %v221
  %v223 = vpop.f32.mrf.mxu0
  %v224 = vadd.f32 0.0, %v223
  %225 = vdwg.mxu0
  %226 = vmatpush.bf16.msra.mxu0 %v173
  %227 = vmatpush.bf16.msra.mxu0 %v170
  %228 = vmatpush.bf16.msra.mxu0 %v167
  %229 = vmatpush.bf16.msra.mxu0 %v164
  %230 = vmatpush.bf16.msra.mxu0 %v161
  %231 = vmatpush.bf16.msra.mxu0 %v158
  %232 = vmatpush.bf16.msra.mxu0 %v155
  %233 = vmatpush.bf16.msra.mxu0 %v152
  %234 = vmatmul.bf16.gmra.mxu0 %v37
  %v235 = vpop.f32.mrf.mxu0
  %v236 = vadd.f32 0.0, %v235
  %v237 = vpop.f32.mrf.mxu0
  %v238 = vadd.f32 0.0, %v237
  %239 = vdwg.mxu0
  %v240 = vpack.c.bf16 %v208, %v208
  %v241 = vpack.c.bf16 %v210, %v210
  %v242 = vpack.c.bf16 %v222, %v222
  %v243 = vpack.c.bf16 %v224, %v224
  %244 = vmatpush.bf16.xpose.msra.mxu0 0
  %245 = vmatpush.bf16.xpose.msra.mxu0 0
  %246 = vmatpush.bf16.xpose.msra.mxu0 0
  %247 = vmatpush.bf16.xpose.msra.mxu0 0
  %248 = vmatpush.bf16.xpose.msra.mxu0 0
  %249 = vmatpush.bf16.xpose.msra.mxu0 0
  %250 = vmatpush.bf16.xpose.msra.mxu0 0
  %251 = vmatpush.bf16.xpose.msra.mxu0 %v242
  %252 = vmatmul.bf16.gmra.mxu0 %v240
  %v253 = vpop.f32.mrf.mxu0
  %v254 = vadd.f32 0.0, %v253
  %v255 = vpop.f32.mrf.mxu0
  %256 = vdwg.mxu0
  %257 = vmatpush.bf16.xpose.msra.mxu0 0
  %258 = vmatpush.bf16.xpose.msra.mxu0 0
  %259 = vmatpush.bf16.xpose.msra.mxu0 0
  %260 = vmatpush.bf16.xpose.msra.mxu0 0
  %261 = vmatpush.bf16.xpose.msra.mxu0 0
  %262 = vmatpush.bf16.xpose.msra.mxu0 0
  %263 = vmatpush.bf16.xpose.msra.mxu0 0
  %264 = vmatpush.bf16.xpose.msra.mxu0 %v243
  %265 = vmatmul.bf16.gmra.mxu0 %v241
  %v266 = vpop.f32.mrf.mxu0
  %v267 = vadd.f32 0.0, %v266
  %v268 = vpop.f32.mrf.mxu0
  %269 = vdwg.mxu0
  %vm270 = vcmask 64512
  %v271 = vsel %vm270, %v254, -inf
  %272 = vmax.xlane.f32.xlu0 %v271
  %v273 = vpop.xlane.xlu0 %272
  %v274 = vsel %vm270, %v267, -inf
  %275 = vmax.xlane.f32.xlu0 %v274
  %v276 = vpop.xlane.xlu0 %275
  %v277 = vsub.f32 %v254, %v273
  %v278 = vsub.f32 %v267, %v276
  %v279 = vmul.f32 %v277, 1.442695
  %v280 = vpow.pop %v279
  %v281 = vmul.f32 %v278, 1.442695
  %v282 = vpow.pop %v281
  %v283 = vsel %vm270, %v280, 0.0
  %284 = vadd.xlane.f32.xlu0 %v283
  %v285 = vpop.xlane.xlu0 %284
  %v286 = vsel %vm270, %v282, 0.0
  %287 = vadd.xlane.f32.xlu0 %v286
  %v288 = vpop.xlane.xlu0 %287
  %v289 = vrcp.pop %v285
  %v290 = vrcp.pop %v288
  %v291 = vmul.f32 %v280, %v289
  %v292 = vmul.f32 %v282, %v290
  %v293 = vpack.c.bf16 %v291, %v291
  %v294 = vpack.c.bf16 %v292, %v292
  %v295 = vpack.c.bf16 %v236, %v236
  %v296 = vpack.c.bf16 %v238, %v238
  %v298 = vsel %vm270, %v293, 0
  %vm300 = vcmask 1043456
  %v302 = vsel %vm300, %v295, 0
  %304 = vmatpush.bf16.msra.mxu0 0
  %305 = vmatpush.bf16.msra.mxu0 0
  %306 = vmatpush.bf16.msra.mxu0 0
  %307 = vmatpush.bf16.msra.mxu0 0
  %308 = vmatpush.bf16.msra.mxu0 0
  %309 = vmatpush.bf16.msra.mxu0 0
  %310 = vmatpush.bf16.msra.mxu0 0
  %311 = vmatpush.bf16.msra.mxu0 %v302
  %312 = vmatmul.bf16.gmra.mxu0 %v298
  %v313 = vpop.f32.mrf.mxu0
  %v314 = vadd.f32 %v32, %v313
  %v315 = vpop.f32.mrf.mxu0
  %316 = vdwg.mxu0
  %v318 = vsel %vm270, %v294, 0
  %v321 = vsel %vm300, %v296, 0
  %323 = vmatpush.bf16.msra.mxu0 0
  %324 = vmatpush.bf16.msra.mxu0 0
  %325 = vmatpush.bf16.msra.mxu0 0
  %326 = vmatpush.bf16.msra.mxu0 0
  %327 = vmatpush.bf16.msra.mxu0 0
  %328 = vmatpush.bf16.msra.mxu0 0
  %329 = vmatpush.bf16.msra.mxu0 0
  %330 = vmatpush.bf16.msra.mxu0 %v321
  %331 = vmatmul.bf16.gmra.mxu0 %v318
  %v332 = vpop.f32.mrf.mxu0
  %v333 = vadd.f32 %v33, %v332
  %v334 = vpop.f32.mrf.mxu0
  %335 = vdwg.mxu0
  %v336 = vrot.slane %v314, 4
  %v337 = vadd.f32 %v314, %v336
  %v338 = vrot.slane %v337, 2
  %v339 = vadd.f32 %v337, %v338
  %v340 = vrot.slane %v339, 1
  %v341 = vadd.f32 %v339, %v340
  %v342 = vrot.slane %v333, 4
  %v343 = vadd.f32 %v333, %v342
  %v344 = vrot.slane %v343, 2
  %v345 = vadd.f32 %v343, %v344
  %v346 = vrot.slane %v345, 1
  %v347 = vadd.f32 %v345, %v346
  %v348 = vrcp.pop 8.0
  %v349 = vmul.f32 8.0, %v348
  %v350 = vsub.f32 1.0, %v349
  %v351 = vmul.f32 %v348, %v350
  %v352 = vadd.f32 %v348, %v351
  %vm353 = vweird.f32 %v348
  %v354 = vsel %vm353, %v348, %v352
  %v355 = vmul.f32 %v341, %v354
  %v356 = vmul.f32 %v347, %v354
  %v357 = vrot.slane %v32, 4
  %v358 = vadd.f32 %v32, %v357
  %v359 = vrot.slane %v358, 2
  %v360 = vadd.f32 %v358, %v359
  %v361 = vrot.slane %v360, 1
  %v362 = vadd.f32 %v360, %v361
  %v363 = vrot.slane %v33, 4
  %v364 = vadd.f32 %v33, %v363
  %v365 = vrot.slane %v364, 2
  %v366 = vadd.f32 %v364, %v365
  %v367 = vrot.slane %v366, 1
  %v368 = vadd.f32 %v366, %v367
  %v369 = vmul.f32 %v362, %v354
  %v370 = vmul.f32 %v368, %v354
  %v371 = vld [vmem:[%s4] sm:$0xff]
  %v372 = vld [vmem:[%s4 + $0x8] sm:$0xff]
  %v373 = vld [vmem:[%s4 + $0x10] sm:$0xff]
  %v374 = vld [vmem:[%s4 + $0x18] sm:$0xff]
  %v375 = vld [vmem:[%s4 + $0x20] sm:$0xff]
  %v376 = vld [vmem:[%s4 + $0x28] sm:$0xff]
  %v377 = vld [vmem:[%s4 + $0x30] sm:$0xff]
  %v378 = vld [vmem:[%s4 + $0x38] sm:$0xff]
  %v379 = vld [vmem:[%s4 + $0x40] sm:$0xff]
  %v380 = vld [vmem:[%s4 + $0x48] sm:$0xff]
  %v381 = vld [vmem:[%s4 + $0x50] sm:$0xff]
  %v382 = vld [vmem:[%s4 + $0x58] sm:$0xff]
  %v383 = vld [vmem:[%s4 + $0x60] sm:$0xff]
  %v384 = vld [vmem:[%s4 + $0x68] sm:$0xff]
  %v385 = vld [vmem:[%s4 + $0x70] sm:$0xff]
  %v386 = vld [vmem:[%s4 + $0x78] sm:$0xff]
  %v387 = vpack.c.bf16 %v355, %v355
  %v388 = vpack.c.bf16 %v356, %v356
  %v389 = vld [vmem:[%s5] sm:$0x1]
  %v390 = vperm.slane %v389, 0
  %v393 = vunpack.c.l.b16 %v387
  %v394 = vunpack.c.l.b16 %v388
  %vm395 = vcmask 1041409
  %v396 = vsel %vm395, %v394, %v393
  %v397 = vpack.c.b16 %v396, %v396
  %v415 = vunpack.c.l.b16 %v371
  %v416 = vunpack.c.l.b16 %v372
  %v417 = vunpack.c.l.b16 %v373
  %v418 = vunpack.c.l.b16 %v374
  %v419 = vunpack.c.l.b16 %v375
  %v420 = vunpack.c.l.b16 %v376
  %v421 = vunpack.c.l.b16 %v377
  %v422 = vunpack.c.l.b16 %v378
  %v423 = vunpack.c.l.b16 %v379
  %v424 = vunpack.c.l.b16 %v380
  %v425 = vunpack.c.l.b16 %v381
  %v426 = vunpack.c.l.b16 %v382
  %v427 = vunpack.c.l.b16 %v383
  %v428 = vunpack.c.l.b16 %v384
  %v429 = vunpack.c.l.b16 %v385
  %v430 = vunpack.c.l.b16 %v386
  %v431 = vpack.c.b16 %v416, %v415
  %v432 = vpack.c.b16 %v418, %v417
  %v433 = vpack.c.b16 %v420, %v419
  %v434 = vpack.c.b16 %v422, %v421
  %v435 = vpack.c.b16 %v424, %v423
  %v436 = vpack.c.b16 %v426, %v425
  %v437 = vpack.c.b16 %v428, %v427
  %v438 = vpack.c.b16 %v430, %v429
  %447 = vmatpush.bf16.msra.mxu0 %v438
  %448 = vmatpush.bf16.msra.mxu0 %v437
  %449 = vmatpush.bf16.msra.mxu0 %v436
  %450 = vmatpush.bf16.msra.mxu0 %v435
  %451 = vmatpush.bf16.msra.mxu0 %v434
  %452 = vmatpush.bf16.msra.mxu0 %v433
  %453 = vmatpush.bf16.msra.mxu0 %v432
  %454 = vmatpush.bf16.msra.mxu0 %v431
  %455 = vmatmul.bf16.gmra.mxu0 %v397
  %v456 = vpop.f32.mrf.mxu0
  %v457 = vadd.f32 %v390, %v456
  %v458 = vpop.f32.mrf.mxu0
  %459 = vdwg.mxu0
  %v460 = vpack.c.bf16 %v369, %v369
  %v461 = vpack.c.bf16 %v370, %v370
  %v462 = vld [vmem:[%s5 + $0x1] sm:$0x1]
  %v463 = vperm.slane %v462, 0
  %v466 = vunpack.c.l.b16 %v460
  %v467 = vunpack.c.l.b16 %v461
  %v468 = vsel %vm395, %v467, %v466
  %v469 = vpack.c.b16 %v468, %v468
  %v471 = vunpack.c.h.b16 %v371
  %v472 = vunpack.c.h.b16 %v372
  %v473 = vunpack.c.h.b16 %v373
  %v474 = vunpack.c.h.b16 %v374
  %v475 = vunpack.c.h.b16 %v375
  %v476 = vunpack.c.h.b16 %v376
  %v477 = vunpack.c.h.b16 %v377
  %v478 = vunpack.c.h.b16 %v378
  %v479 = vunpack.c.h.b16 %v379
  %v480 = vunpack.c.h.b16 %v380
  %v481 = vunpack.c.h.b16 %v381
  %v482 = vunpack.c.h.b16 %v382
  %v483 = vunpack.c.h.b16 %v383
  %v484 = vunpack.c.h.b16 %v384
  %v485 = vunpack.c.h.b16 %v385
  %v486 = vunpack.c.h.b16 %v386
  %v487 = vpack.c.b16 %v472, %v471
  %v488 = vpack.c.b16 %v474, %v473
  %v489 = vpack.c.b16 %v476, %v475
  %v490 = vpack.c.b16 %v478, %v477
  %v491 = vpack.c.b16 %v480, %v479
  %v492 = vpack.c.b16 %v482, %v481
  %v493 = vpack.c.b16 %v484, %v483
  %v494 = vpack.c.b16 %v486, %v485
  %503 = vmatpush.bf16.msra.mxu0 %v494
  %504 = vmatpush.bf16.msra.mxu0 %v493
  %505 = vmatpush.bf16.msra.mxu0 %v492
  %506 = vmatpush.bf16.msra.mxu0 %v491
  %507 = vmatpush.bf16.msra.mxu0 %v490
  %508 = vmatpush.bf16.msra.mxu0 %v489
  %509 = vmatpush.bf16.msra.mxu0 %v488
  %510 = vmatpush.bf16.msra.mxu0 %v487
  %511 = vmatmul.bf16.gmra.mxu0 %v469
  %v512 = vpop.f32.mrf.mxu0
  %v513 = vadd.f32 %v463, %v512
  %v514 = vpop.f32.mrf.mxu0
  %515 = vdwg.mxu0
  %516 = vst [vmem:[%s6] sm:$0x3] %v457
  %vm519 = vcmask 1044484
  %v520 = vsel %vm519, %v355, %v355
  %vm521 = vcmask 1046534
  %v522 = vsel %vm521, %v355, %v520
  %v523 = vrot.slane %v356, 7
  %v524 = vsel %vm395, %v523, %v522
  %vm525 = vcmask 1043459
  %v526 = vsel %vm525, %v523, %v524
  %vm527 = vcmask 1045509
  %v528 = vsel %vm527, %v523, %v526
  %vm529 = vcmask 1047559
  %v530 = vsel %vm529, %v523, %v528
  %532 = vst [vmem:[%s6 + $0x2] sm:$0x3] %v530
  %533 = vst [vmem:[%s6 + $0x4] sm:$0x3] %v513
  %v534 = vxor.u32 %v457, 2147483648
  %v535 = vmul.f32 %v534, 1.442695
  %v536 = vpow.pop %v535
  %v537 = vadd.f32 %v536, 1.0
  %v538 = vrcp.pop %v537
  %v539 = vmul.f32 %v537, %v538
  %v540 = vsub.f32 1.0, %v539
  %v541 = vmul.f32 %v538, %v540
  %v542 = vadd.f32 %v538, %v541
  %vm543 = vweird.f32 %v537
  %vm544 = vweird.f32 %v538
  %vm545 = vmor %vm543, %vm544
  %v546 = vsel %vm545, %v538, %v542
  %v547 = vand.u32 2147483647, %v537
  %vm548 = vcmp.eq.f32.partialorder %v547, 8.507059e+37
  %v549 = vand.u32 %v537, 2147483648
  %v550 = vor.u32 1.1754944e-38, %v549
  %v551 = vsel %vm548, %v550, %v546
  %v552 = vmul.f32 1.0, %v551
  %553 = vst [vmem:[%s6 + $0x6] sm:$0x3] %v552
  %v554 = vxor.u32 %v513, 2147483648
  %v555 = vmul.f32 %v554, 1.442695
  %v556 = vpow.pop %v555
  %v557 = vadd.f32 %v556, 1.0
  %v558 = vrcp.pop %v557
  %v559 = vmul.f32 %v557, %v558
  %v560 = vsub.f32 1.0, %v559
  %v561 = vmul.f32 %v558, %v560
  %v562 = vadd.f32 %v558, %v561
  %vm563 = vweird.f32 %v557
  %vm564 = vweird.f32 %v558
  %vm565 = vmor %vm563, %vm564
  %v566 = vsel %vm565, %v558, %v562
  %v567 = vand.u32 2147483647, %v557
  %vm568 = vcmp.eq.f32.partialorder %v567, 8.507059e+37
  %v569 = vand.u32 %v557, 2147483648
  %v570 = vor.u32 1.1754944e-38, %v569
  %v571 = vsel %vm568, %v570, %v566
  %v572 = vmul.f32 1.0, %v571
  %573 = vst [vmem:[%s6 + $0x8] sm:$0x3] %v572
  // Predicated region
  $region26: #{trans_pos_101_forward.1} parent=0 // pred_check
    _
  $region27: #{trans_pos_101_forward.1} parent=0 // pred_check_branch
    %575 = sbr.rel (0) target = $region29
  $region28: #{trans_pos_101_forward.1} parent=0 // pred_region
    _
  $region29: #{trans_pos_101_forward.1} parent=0 // pred_fallthru
    _
  // Predicated region
  $region30: #{trans_pos_101_forward.1} parent=0 // pred_check
    _
  $region31: #{trans_pos_101_forward.1} parent=0 // pred_check_branch
    %577 = sbr.rel (0) target = $region33
  $region32: #{trans_pos_101_forward.1} parent=0 // pred_region
    _
  $region33: #{trans_pos_101_forward.1} parent=0 // pred_fallthru
    _

</llo_original>
